<compile_context>
chip_gen: v5e
topology: v5e:2x2
jax: 0.10.0
libtpu: 0.0.40
codegen_flags: <defaults>
</compile_context>

<pallas_src>
import jax
import jax.numpy as jnp
from jax.experimental import pallas as pl
from jax.experimental.pallas import tpu as pltpu

_LANE = 128                      # lane width: padding granularity for all dims
_VMEM_LIMIT_CACHE = None


# ---------------------------------------------------------------------------
# small helpers
# ---------------------------------------------------------------------------
def _round_up(x, m):
    return ((x + m - 1) // m) * m


def _pad2d(x, rows, cols):
    r, c = x.shape
    return jnp.pad(x, ((0, rows - r), (0, cols - c)))


def _fit(block, dim):
    """Largest block <= `block` that divides `dim` (dims are 128-padded)."""
    block = min(block, dim)
    while dim % block:
        block //= 2
    return block


def _vmem_limit_bytes():
    """Generation-aware scoped-VMEM limit: ~96 MiB v5e/v6e, ~48 MiB v7x."""
    global _VMEM_LIMIT_CACHE
    if _VMEM_LIMIT_CACHE is None:
        try:
            cap = int(pltpu.get_tpu_info().vmem_capacity_bytes)
        except Exception:  # pragma: no cover - conservative fallback
            cap = 64 * 1024 * 1024
        _VMEM_LIMIT_CACHE = min((cap * 3) // 4, 110 * 1024 * 1024)
    return _VMEM_LIMIT_CACHE


# ---------------------------------------------------------------------------
# Pallas kernels
# ---------------------------------------------------------------------------
def _mm_kernel(a_ref, b_ref, o_ref, acc_ref):
    # tiled C = A @ B with f32 accumulation over the K grid axis
    @pl.when(pl.program_id(2) == 0)
    def _():
        acc_ref[...] = jnp.zeros_like(acc_ref)

    acc_ref[...] += jnp.dot(a_ref[...], b_ref[...],
                            preferred_element_type=jnp.float32)

    @pl.when(pl.program_id(2) == pl.num_programs(2) - 1)
    def _():
        o_ref[...] = acc_ref[...].astype(o_ref.dtype)


def _mm_bias_relu_kernel(a_ref, b_ref, bias_ref, o_ref, acc_ref):
    # tiled C = relu(A @ B + bias), bias/ReLU applied in f32 on finalize
    @pl.when(pl.program_id(2) == 0)
    def _():
        acc_ref[...] = jnp.zeros_like(acc_ref)

    acc_ref[...] += jnp.dot(a_ref[...], b_ref[...],
                            preferred_element_type=jnp.float32)

    @pl.when(pl.program_id(2) == pl.num_programs(2) - 1)
    def _():
        o_ref[...] = jnp.maximum(acc_ref[...] + bias_ref[...], 0.0
                                 ).astype(o_ref.dtype)


def edge_mlp_kernel(hr_ref, hc_ref, ea_ref, w1r_ref, w1c_ref, w1e_ref,
                    b1_ref, w2_ref, b2_ref, out_ref):
    # hidden = relu(h_row @ W1r + h_col @ W1c + e_attr * w1e_row + b1)
    acc = jnp.dot(hr_ref[...], w1r_ref[...], preferred_element_type=jnp.float32)
    acc = acc + jnp.dot(hc_ref[...], w1c_ref[...],
                        preferred_element_type=jnp.float32)
    ea = jnp.broadcast_to(ea_ref[...], acc.shape)      # (TE,1) -> lane bcast
    w1e = jnp.broadcast_to(w1e_ref[...], acc.shape)    # (1,Dp) -> sublane bcast
    acc = acc + ea * w1e
    hidden = jnp.maximum(acc + b1_ref[...], 0.0)
    # Final linear on the MXU in bf16 (f32 accumulation); W2/b2 are
    # zero-padded to 128 lanes so the output store is lane-dense (column 0
    # carries the score).  Output kept f32 for score precision.
    out_ref[...] = (jnp.dot(hidden.astype(jnp.bfloat16), w2_ref[...],
                            preferred_element_type=jnp.float32)
                    + b2_ref[...])


# ---------------------------------------------------------------------------
# pallas_call wrappers
# ---------------------------------------------------------------------------
def tiled_matmul(a, b, bias=None, *, out_dtype=jnp.bfloat16,
                 bm=512, bn=256, bk=512):
    """C = A @ B (optionally fused relu(...+bias)) with a 3-D tiled grid."""
    m, k = a.shape
    k2, n = b.shape
    assert k == k2
    # Keep >=2 row tiles whenever possible so v7x megacore can split the
    # "parallel" row axis across its two TensorCores.
    if m >= 2 * _LANE:
        bm = min(bm, m // 2)
    bm, bn, bk = _fit(bm, m), _fit(bn, n), _fit(bk, k)
    grid = (m // bm, n // bn, k // bk)

    a_spec = pl.BlockSpec((bm, bk), lambda i, j, kk: (i, kk))
    b_spec = pl.BlockSpec((bk, bn), lambda i, j, kk: (kk, j))
    o_spec = pl.BlockSpec((bm, bn), lambda i, j, kk: (i, j))

    if bias is None:
        kernel = _mm_kernel
        in_specs = [a_spec, b_spec]
        args = (a, b)
    else:
        kernel = _mm_bias_relu_kernel
        in_specs = [a_spec, b_spec,
                    pl.BlockSpec((1, bn), lambda i, j, kk: (0, j))]
        args = (a, b, bias)

    cost = pl.CostEstimate(
        flops=2 * m * n * k,
        transcendentals=0,
        bytes_accessed=(m * k * a.dtype.itemsize + k * n * b.dtype.itemsize
                        + m * n * jnp.dtype(out_dtype).itemsize),
    )

    return pl.pallas_call(
        kernel,
        out_shape=jax.ShapeDtypeStruct((m, n), out_dtype),
        grid_spec=pltpu.PrefetchScalarGridSpec(
            num_scalar_prefetch=0,
            grid=grid,
            in_specs=in_specs,
            out_specs=o_spec,
            scratch_shapes=[pltpu.VMEM((bm, bn), jnp.float32)],
        ),
        compiler_params=pltpu.CompilerParams(
            dimension_semantics=("parallel", "parallel", "arbitrary"),
            vmem_limit_bytes=_vmem_limit_bytes(),
        ),
        cost_estimate=cost,
    )(*args)


def gcn_layer(a_norm_bf16, x_bf16, w_bf16, bias_f32):
    # relu(A_norm @ (X @ W) + b): X@W hoisted (computed once), then the big
    # A_norm @ XW matmul with fused bias+ReLU epilogue.
    xw = tiled_matmul(x_bf16, w_bf16, out_dtype=jnp.bfloat16)
    return tiled_matmul(a_norm_bf16, xw, bias=bias_f32,
                        out_dtype=jnp.bfloat16)


def edge_mlp(hr, hc, ea, w1r, w1c, w1e, b1, w2, b2, te):
    e_p, h_p = hr.shape
    d_p = w1r.shape[1]
    lane = w2.shape[1]
    grid = (e_p // te,)

    def row_spec(cols):
        return pl.BlockSpec((te, cols), lambda i: (i, 0))

    def full_spec(shape):
        return pl.BlockSpec(shape, lambda i: (0, 0))

    return pl.pallas_call(
        edge_mlp_kernel,
        out_shape=jax.ShapeDtypeStruct((e_p, lane), jnp.float32),
        grid_spec=pltpu.PrefetchScalarGridSpec(
            num_scalar_prefetch=0,
            grid=grid,
            in_specs=[
                row_spec(h_p),          # h[row]   (bf16)
                row_spec(h_p),          # h[col]   (bf16)
                row_spec(1),            # edge_attr (f32)
                full_spec((h_p, d_p)),  # W1 row block (bf16)
                full_spec((h_p, d_p)),  # W1 col block (bf16)
                full_spec((1, d_p)),    # W1 edge-attr row (f32)
                full_spec((1, d_p)),    # b1 (f32)
                full_spec((d_p, lane)),  # W2 padded (bf16, col0 valid)
                full_spec((1, lane)),    # b2 padded (f32)
            ],
            out_specs=row_spec(lane),
        ),
        compiler_params=pltpu.CompilerParams(
            dimension_semantics=("parallel",),
            vmem_limit_bytes=_vmem_limit_bytes(),
        ),
    )(hr, hc, ea, w1r, w1c, w1e, b1, w2, b2)


# ---------------------------------------------------------------------------
# Plain-JAX glue + full forward
# ---------------------------------------------------------------------------
def build_norm_adj_padded(edge_index, num_nodes, n_pad):
    """PyG GCNConv normalization, built directly at padded size in bf16.

    A_hat = A + remaining self loops; A_norm[i, j] = d^-1/2[i] d^-1/2[j] for
    each edge j -> i.  Padded rows/cols have zero degree -> stay exactly zero,
    which keeps the padded node rows of h1/h2 inert downstream.
    """
    row, col = edge_index
    adj = jnp.zeros((n_pad, n_pad), jnp.float32)
    adj = adj.at[col, row].add(1.0)          # adj[i, j] = weight of edge j -> i
    # add_remaining_self_loops: only nodes without an existing self loop, and
    # only real (unpadded) nodes.
    nodes = jnp.arange(n_pad, dtype=jnp.int32)
    diag = adj[nodes, nodes]
    need_loop = (diag == 0.0) & (nodes < num_nodes)
    adj = adj.at[nodes, nodes].add(need_loop.astype(jnp.float32))
    deg = adj.sum(axis=1)
    d_inv_sqrt = jnp.where(deg > 0.0, jax.lax.rsqrt(jnp.maximum(deg, 1e-12)),
                           0.0)
    return (d_inv_sqrt[:, None] * adj * d_inv_sqrt[None, :]
            ).astype(jnp.bfloat16)


def bond_break_gnn_forward(params, x, edge_index, edge_attr):
    n, f = x.shape
    h_dim = params["w_conv1"].shape[1]
    mlp_dim = params["w_lin1"].shape[1]          # 64

    # 128-granular (lane-width) padding; zeros, mathematically inert.
    n_p = _round_up(n, _LANE)
    f_p = _round_up(f, _LANE)
    h_p = _round_up(h_dim, _LANE)
    d_p = _round_up(mlp_dim, _LANE)

    # --- normalized adjacency built at padded size, bf16 (glue) ------------
    a_p = build_norm_adj_padded(edge_index, n, n_p)
    x_p = _pad2d(x, n_p, f_p).astype(jnp.bfloat16)

    w_c1 = _pad2d(params["w_conv1"], f_p, h_p).astype(jnp.bfloat16)
    b_c1 = _pad2d(params["b_conv1"], 1, h_p)                     # f32
    w_c2 = _pad2d(params["w_conv2"], h_p, h_p).astype(jnp.bfloat16)
    b_c2 = _pad2d(params["b_conv2"], 1, h_p)                     # f32

    # --- two GCN layers (Pallas) -------------------------------------------
    h1 = gcn_layer(a_p, x_p, w_c1, b_c1)       # (n_p, h_p) bf16
    h2 = gcn_layer(a_p, h1, w_c2, b_c2)        # (n_p, h_p) bf16

    # --- edge feature gather (glue) ----------------------------------------
    row, col = edge_index
    hr = h2[row]                                # (E, h_p) bf16, XLA gather
    hc = h2[col]

    e = edge_attr.shape[0]
    te = min(1024, _round_up(e, 16))            # floor 16 (bf16 sublane tile)
    if te >= 32 and _round_up(e, te) == te:     # single tile -> split for v7x
        te = _round_up(te // 2, 16)
    e_p = _round_up(e, te)
    hr_p = _pad2d(hr, e_p, h_p)
    hc_p = _pad2d(hc, e_p, h_p)
    ea_p = _pad2d(edge_attr.astype(jnp.float32), e_p, 1)

    # split/pad the edge-MLP weights (avoids the ragged 2H+1 concat dim)
    w_lin1 = params["w_lin1"]                   # (2H+1, 64)
    w1r = _pad2d(w_lin1[:h_dim], h_p, d_p).astype(jnp.bfloat16)
    w1c = _pad2d(w_lin1[h_dim:2 * h_dim], h_p, d_p).astype(jnp.bfloat16)
    w1e = _pad2d(w_lin1[2 * h_dim:], 1, d_p)                     # f32
    b_l1 = _pad2d(params["b_lin1"], 1, d_p)                      # f32
    w_l2 = _pad2d(params["w_lin2"], d_p, _LANE).astype(jnp.bfloat16)
    b_l2 = _pad2d(params["b_lin2"], 1, _LANE)                    # f32

    out = edge_mlp(hr_p, hc_p, ea_p, w1r, w1c, w1e, b_l1, w_l2, b_l2, te)
    return out[:e, 0]


def init_params(key, node_feat_dim, hidden_dim=64):
    ks = jax.random.split(key, 4)

    def glorot(k, shape):
        fan_in, fan_out = shape
        lim = (6.0 / (fan_in + fan_out)) ** 0.5
        return jax.random.uniform(k, shape, jnp.float32, -lim, lim)

    return {
        # GCNConv: weight (in, hidden), bias kept 2D for the kernels
        "w_conv1": glorot(ks[0], (node_feat_dim, hidden_dim)),
        "b_conv1": jnp.zeros((1, hidden_dim), jnp.float32),
        "w_conv2": glorot(ks[1], (hidden_dim, hidden_dim)),
        "b_conv2": jnp.zeros((1, hidden_dim), jnp.float32),
        # nn.Linear(2*hidden+1, 64) and nn.Linear(64, 1)
        "w_lin1": glorot(ks[2], (2 * hidden_dim + 1, 64)),
        "b_lin1": jnp.zeros((1, 64), jnp.float32),
        "w_lin2": glorot(ks[3], (64, 1)),
        "b_lin2": jnp.zeros((1, 1), jnp.float32),
    }


if __name__ == "__main__":
    key = jax.random.PRNGKey(0)
    k_x, k_ei, k_ea, k_p = jax.random.split(key, 4)

    # Small synthetic molecular graph: 8 nodes, 16-dim node features,
    # 12 edges, hidden_dim=32, edge_attr is (E, 1).
    N, F, H, E = 8, 16, 32, 12

    x = jax.random.normal(k_x, (N, F), jnp.float32)
    edge_index = jax.random.randint(k_ei, (2, E), 0, N, jnp.int32)
    edge_attr = jax.random.normal(k_ea, (E, 1), jnp.float32)

    params = init_params(k_p, node_feat_dim=F, hidden_dim=H)

    fwd = jax.jit(bond_break_gnn_forward)
    out = fwd(params, x, edge_index, edge_attr)
    out = jax.block_until_ready(out)
    assert out.shape == (E,)
    print("KERNEL_OK")
</pallas_src>

<mosaic_0001>
module attributes {stable_mosaic.version = 11 : i64} {
  func.func @_mm_bias_relu_kernel(%arg0: i32, %arg1: i32, %arg2: i32, %arg3: memref<128x128xbf16, #tpu.memory_space<vmem>>, %arg4: memref<128x128xbf16, #tpu.memory_space<vmem>>, %arg5: memref<1x128xf32, #tpu.memory_space<vmem>>, %arg6: memref<128x128xbf16, #tpu.memory_space<vmem>>, %arg7: memref<128x128xf32, #tpu.memory_space<vmem>>) attributes {dimension_semantics = [#tpu.dimension_semantics<parallel>, #tpu.dimension_semantics<parallel>, #tpu.dimension_semantics<arbitrary>], iteration_bounds = array<i64: 1, 1, 1>, scalar_prefetch = 0 : i64, scratch_operands = 1 : i64, tpu.core_type = #tpu.core_type<tc>, window_params = [{transform_indices = @transform_0, window_bounds = array<i64: 128, 128>}, {transform_indices = @transform_1, window_bounds = array<i64: 128, 128>}, {transform_indices = @transform_2, window_bounds = array<i64: 1, 128>}, {transform_indices = @transform_3, window_bounds = array<i64: 128, 128>}]} {
    %c0_i32 = arith.constant 0 : i32
    %0 = arith.cmpi eq, %arg2, %c0_i32 : i32
    %1 = arith.extui %0 : i1 to i32
    %c0_i32_0 = arith.constant 0 : i32
    %2 = arith.cmpi ne, %1, %c0_i32_0 : i32
    scf.if %2 {
      %cst_10 = arith.constant 0.000000e+00 : f32
      %12 = vector.broadcast %cst_10 : f32 to vector<128x128xf32>
      %c0_11 = arith.constant 0 : index
      %c0_12 = arith.constant 0 : index
      %13 = vector.load %arg7[%c0_11, %c0_12] : memref<128x128xf32, #tpu.memory_space<vmem>>, vector<128x128xf32>
      tpu.vector_store %arg7[%c0_11, %c0_12], %12 {strides = array<i32>} : memref<128x128xf32, #tpu.memory_space<vmem>>, vector<128x128xf32>,
    } else {
    }
    %c0 = arith.constant 0 : index
    %c0_1 = arith.constant 0 : index
    %3 = vector.load %arg7[%c0, %c0_1] : memref<128x128xf32, #tpu.memory_space<vmem>>, vector<128x128xf32>
    %c0_2 = arith.constant 0 : index
    %c0_3 = arith.constant 0 : index
    %4 = vector.load %arg3[%c0_2, %c0_3] : memref<128x128xbf16, #tpu.memory_space<vmem>>, vector<128x128xbf16>
    %c0_4 = arith.constant 0 : index
    %c0_5 = arith.constant 0 : index
    %5 = vector.load %arg4[%c0_4, %c0_5] : memref<128x128xbf16, #tpu.memory_space<vmem>>, vector<128x128xbf16>
    %cst = arith.constant dense<0.000000e+00> : vector<128x128xf32>
    %6 = tpu.matmul %4, %5, %cst {dimension_numbers = #tpu.dot_dimension_numbers<[1], [0], [0], [1], [0, 0, 1, 1], [], []>} : vector<128x128xbf16>, vector<128x128xbf16>, vector<128x128xf32> -> vector<128x128xf32>
    %7 = arith.addf %3, %6 : vector<128x128xf32>
    %c0_6 = arith.constant 0 : index
    %c0_7 = arith.constant 0 : index
    %8 = vector.load %arg7[%c0_6, %c0_7] : memref<128x128xf32, #tpu.memory_space<vmem>>, vector<128x128xf32>
    tpu.vector_store %arg7[%c0_6, %c0_7], %7 {strides = array<i32>} : memref<128x128xf32, #tpu.memory_space<vmem>>, vector<128x128xf32>,
    %c0_i32_8 = arith.constant 0 : i32
    %9 = arith.cmpi eq, %arg2, %c0_i32_8 : i32
    %10 = arith.extui %9 : i1 to i32
    %c0_i32_9 = arith.constant 0 : i32
    %11 = arith.cmpi ne, %10, %c0_i32_9 : i32
    scf.if %11 {
      %c0_10 = arith.constant 0 : index
      %c0_11 = arith.constant 0 : index
      %12 = vector.load %arg7[%c0_10, %c0_11] : memref<128x128xf32, #tpu.memory_space<vmem>>, vector<128x128xf32>
      %c0_12 = arith.constant 0 : index
      %c0_13 = arith.constant 0 : index
      %13 = vector.load %arg5[%c0_12, %c0_13] : memref<1x128xf32, #tpu.memory_space<vmem>>, vector<1x128xf32>
      %14 = vector.broadcast %13 : vector<1x128xf32> to vector<128x128xf32>
      %15 = arith.addf %12, %14 : vector<128x128xf32>
      %cst_14 = arith.constant 0.000000e+00 : f32
      %16 = vector.broadcast %cst_14 : f32 to vector<128x128xf32>
      %17 = arith.maximumf %15, %16 : vector<128x128xf32>
      %18 = arith.truncf %17 : vector<128x128xf32> to vector<128x128xbf16>
      %c0_15 = arith.constant 0 : index
      %c0_16 = arith.constant 0 : index
      %19 = vector.load %arg6[%c0_15, %c0_16] : memref<128x128xbf16, #tpu.memory_space<vmem>>, vector<128x128xbf16>
      tpu.vector_store %arg6[%c0_15, %c0_16], %18 {strides = array<i32>} : memref<128x128xbf16, #tpu.memory_space<vmem>>, vector<128x128xbf16>,
    } else {
    }
    return
  }
  func.func @transform_0(%arg0: i32, %arg1: i32, %arg2: i32) -> (i32, i32) {
    %c0_i32 = arith.constant 0 : i32
    return %arg0, %arg2 : i32, i32
  }
  func.func @transform_1(%arg0: i32, %arg1: i32, %arg2: i32) -> (i32, i32) {
    %c0_i32 = arith.constant 0 : i32
    return %arg2, %arg1 : i32, i32
  }
  func.func @transform_2(%arg0: i32, %arg1: i32, %arg2: i32) -> (i32, i32) {
    %c0_i32 = arith.constant 0 : i32
    %c0_i32_0 = arith.constant 0 : i32
    return %c0_i32, %arg1 : i32, i32
  }
  func.func @transform_3(%arg0: i32, %arg1: i32, %arg2: i32) -> (i32, i32) {
    %c0_i32 = arith.constant 0 : i32
    return %arg0, %arg1 : i32, i32
  }
}

module attributes {stable_mosaic.version = 11 : i64} {
  func.func @_mm_kernel(%arg0: i32, %arg1: i32, %arg2: i32, %arg3: memref<128x128xbf16, #tpu.memory_space<vmem>>, %arg4: memref<128x128xbf16, #tpu.memory_space<vmem>>, %arg5: memref<128x128xbf16, #tpu.memory_space<vmem>>, %arg6: memref<128x128xf32, #tpu.memory_space<vmem>>) attributes {dimension_semantics = [#tpu.dimension_semantics<parallel>, #tpu.dimension_semantics<parallel>, #tpu.dimension_semantics<arbitrary>], iteration_bounds = array<i64: 1, 1, 1>, scalar_prefetch = 0 : i64, scratch_operands = 1 : i64, tpu.core_type = #tpu.core_type<tc>, window_params = [{transform_indices = @transform_0, window_bounds = array<i64: 128, 128>}, {transform_indices = @transform_1, window_bounds = array<i64: 128, 128>}, {transform_indices = @transform_2, window_bounds = array<i64: 128, 128>}]} {
    %c0_i32 = arith.constant 0 : i32
    %0 = arith.cmpi eq, %arg2, %c0_i32 : i32
    %1 = arith.extui %0 : i1 to i32
    %c0_i32_0 = arith.constant 0 : i32
    %2 = arith.cmpi ne, %1, %c0_i32_0 : i32
    scf.if %2 {
      %cst_10 = arith.constant 0.000000e+00 : f32
      %12 = vector.broadcast %cst_10 : f32 to vector<128x128xf32>
      %c0_11 = arith.constant 0 : index
      %c0_12 = arith.constant 0 : index
      %13 = vector.load %arg6[%c0_11, %c0_12] : memref<128x128xf32, #tpu.memory_space<vmem>>, vector<128x128xf32>
      tpu.vector_store %arg6[%c0_11, %c0_12], %12 {strides = array<i32>} : memref<128x128xf32, #tpu.memory_space<vmem>>, vector<128x128xf32>,
    } else {
    }
    %c0 = arith.constant 0 : index
    %c0_1 = arith.constant 0 : index
    %3 = vector.load %arg6[%c0, %c0_1] : memref<128x128xf32, #tpu.memory_space<vmem>>, vector<128x128xf32>
    %c0_2 = arith.constant 0 : index
    %c0_3 = arith.constant 0 : index
    %4 = vector.load %arg3[%c0_2, %c0_3] : memref<128x128xbf16, #tpu.memory_space<vmem>>, vector<128x128xbf16>
    %c0_4 = arith.constant 0 : index
    %c0_5 = arith.constant 0 : index
    %5 = vector.load %arg4[%c0_4, %c0_5] : memref<128x128xbf16, #tpu.memory_space<vmem>>, vector<128x128xbf16>
    %cst = arith.constant dense<0.000000e+00> : vector<128x128xf32>
    %6 = tpu.matmul %4, %5, %cst {dimension_numbers = #tpu.dot_dimension_numbers<[1], [0], [0], [1], [0, 0, 1, 1], [], []>} : vector<128x128xbf16>, vector<128x128xbf16>, vector<128x128xf32> -> vector<128x128xf32>
    %7 = arith.addf %3, %6 : vector<128x128xf32>
    %c0_6 = arith.constant 0 : index
    %c0_7 = arith.constant 0 : index
    %8 = vector.load %arg6[%c0_6, %c0_7] : memref<128x128xf32, #tpu.memory_space<vmem>>, vector<128x128xf32>
    tpu.vector_store %arg6[%c0_6, %c0_7], %7 {strides = array<i32>} : memref<128x128xf32, #tpu.memory_space<vmem>>, vector<128x128xf32>,
    %c0_i32_8 = arith.constant 0 : i32
    %9 = arith.cmpi eq, %arg2, %c0_i32_8 : i32
    %10 = arith.extui %9 : i1 to i32
    %c0_i32_9 = arith.constant 0 : i32
    %11 = arith.cmpi ne, %10, %c0_i32_9 : i32
    scf.if %11 {
      %c0_10 = arith.constant 0 : index
      %c0_11 = arith.constant 0 : index
      %12 = vector.load %arg6[%c0_10, %c0_11] : memref<128x128xf32, #tpu.memory_space<vmem>>, vector<128x128xf32>
      %13 = arith.truncf %12 : vector<128x128xf32> to vector<128x128xbf16>
      %c0_12 = arith.constant 0 : index
      %c0_13 = arith.constant 0 : index
      %14 = vector.load %arg5[%c0_12, %c0_13] : memref<128x128xbf16, #tpu.memory_space<vmem>>, vector<128x128xbf16>
      tpu.vector_store %arg5[%c0_12, %c0_13], %13 {strides = array<i32>} : memref<128x128xbf16, #tpu.memory_space<vmem>>, vector<128x128xbf16>,
    } else {
    }
    return
  }
  func.func @transform_0(%arg0: i32, %arg1: i32, %arg2: i32) -> (i32, i32) {
    %c0_i32 = arith.constant 0 : i32
    return %arg0, %arg2 : i32, i32
  }
  func.func @transform_1(%arg0: i32, %arg1: i32, %arg2: i32) -> (i32, i32) {
    %c0_i32 = arith.constant 0 : i32
    return %arg2, %arg1 : i32, i32
  }
  func.func @transform_2(%arg0: i32, %arg1: i32, %arg2: i32) -> (i32, i32) {
    %c0_i32 = arith.constant 0 : i32
    return %arg0, %arg1 : i32, i32
  }
}

module attributes {stable_mosaic.version = 11 : i64} {
  func.func @edge_mlp_kernel(%arg0: i32, %arg1: memref<16x128xbf16, #tpu.memory_space<vmem>>, %arg2: memref<16x128xbf16, #tpu.memory_space<vmem>>, %arg3: memref<16x1xf32, #tpu.memory_space<vmem>>, %arg4: memref<128x128xbf16, #tpu.memory_space<vmem>>, %arg5: memref<128x128xbf16, #tpu.memory_space<vmem>>, %arg6: memref<1x128xf32, #tpu.memory_space<vmem>>, %arg7: memref<1x128xf32, #tpu.memory_space<vmem>>, %arg8: memref<128x128xbf16, #tpu.memory_space<vmem>>, %arg9: memref<1x128xf32, #tpu.memory_space<vmem>>, %arg10: memref<16x128xf32, #tpu.memory_space<vmem>>) attributes {dimension_semantics = [#tpu.dimension_semantics<parallel>], iteration_bounds = array<i64: 1>, scalar_prefetch = 0 : i64, scratch_operands = 0 : i64, tpu.core_type = #tpu.core_type<tc>, window_params = [{transform_indices = @transform_0, window_bounds = array<i64: 16, 128>}, {transform_indices = @transform_1, window_bounds = array<i64: 16, 128>}, {transform_indices = @transform_2, window_bounds = array<i64: 16, 1>}, {pipeline_mode = #tpu.pipeline_mode<synchronous>, transform_indices = @transform_3, window_bounds = array<i64: 128, 128>}, {pipeline_mode = #tpu.pipeline_mode<synchronous>, transform_indices = @transform_4, window_bounds = array<i64: 128, 128>}, {pipeline_mode = #tpu.pipeline_mode<synchronous>, transform_indices = @transform_5, window_bounds = array<i64: 1, 128>}, {pipeline_mode = #tpu.pipeline_mode<synchronous>, transform_indices = @transform_6, window_bounds = array<i64: 1, 128>}, {pipeline_mode = #tpu.pipeline_mode<synchronous>, transform_indices = @transform_7, window_bounds = array<i64: 128, 128>}, {pipeline_mode = #tpu.pipeline_mode<synchronous>, transform_indices = @transform_8, window_bounds = array<i64: 1, 128>}, {transform_indices = @transform_9, window_bounds = array<i64: 16, 128>}]} {
    %c0 = arith.constant 0 : index
    %c0_0 = arith.constant 0 : index
    %0 = vector.load %arg1[%c0, %c0_0] : memref<16x128xbf16, #tpu.memory_space<vmem>>, vector<16x128xbf16>
    %c0_1 = arith.constant 0 : index
    %c0_2 = arith.constant 0 : index
    %1 = vector.load %arg4[%c0_1, %c0_2] : memref<128x128xbf16, #tpu.memory_space<vmem>>, vector<128x128xbf16>
    %cst = arith.constant dense<0.000000e+00> : vector<16x128xf32>
    %2 = tpu.matmul %0, %1, %cst {dimension_numbers = #tpu.dot_dimension_numbers<[1], [0], [0], [1], [0, 0, 1, 1], [], []>} : vector<16x128xbf16>, vector<128x128xbf16>, vector<16x128xf32> -> vector<16x128xf32>
    %c0_3 = arith.constant 0 : index
    %c0_4 = arith.constant 0 : index
    %3 = vector.load %arg2[%c0_3, %c0_4] : memref<16x128xbf16, #tpu.memory_space<vmem>>, vector<16x128xbf16>
    %c0_5 = arith.constant 0 : index
    %c0_6 = arith.constant 0 : index
    %4 = vector.load %arg5[%c0_5, %c0_6] : memref<128x128xbf16, #tpu.memory_space<vmem>>, vector<128x128xbf16>
    %cst_7 = arith.constant dense<0.000000e+00> : vector<16x128xf32>
    %5 = tpu.matmul %3, %4, %cst_7 {dimension_numbers = #tpu.dot_dimension_numbers<[1], [0], [0], [1], [0, 0, 1, 1], [], []>} : vector<16x128xbf16>, vector<128x128xbf16>, vector<16x128xf32> -> vector<16x128xf32>
    %6 = arith.addf %2, %5 : vector<16x128xf32>
    %c0_8 = arith.constant 0 : index
    %c0_9 = arith.constant 0 : index
    %7 = vector.load %arg3[%c0_8, %c0_9] : memref<16x1xf32, #tpu.memory_space<vmem>>, vector<16x1xf32>
    %8 = vector.shape_cast %7 : vector<16x1xf32> to vector<16x1xf32>
    %9 = vector.broadcast %8 : vector<16x1xf32> to vector<16x128xf32>
    %c0_10 = arith.constant 0 : index
    %c0_11 = arith.constant 0 : index
    %10 = vector.load %arg6[%c0_10, %c0_11] : memref<1x128xf32, #tpu.memory_space<vmem>>, vector<1x128xf32>
    %11 = vector.shape_cast %10 : vector<1x128xf32> to vector<1x128xf32>
    %12 = vector.broadcast %11 : vector<1x128xf32> to vector<16x128xf32>
    %13 = arith.mulf %9, %12 : vector<16x128xf32>
    %14 = arith.addf %6, %13 : vector<16x128xf32>
    %c0_12 = arith.constant 0 : index
    %c0_13 = arith.constant 0 : index
    %15 = vector.load %arg7[%c0_12, %c0_13] : memref<1x128xf32, #tpu.memory_space<vmem>>, vector<1x128xf32>
    %16 = vector.broadcast %15 : vector<1x128xf32> to vector<16x128xf32>
    %17 = arith.addf %14, %16 : vector<16x128xf32>
    %cst_14 = arith.constant 0.000000e+00 : f32
    %18 = vector.broadcast %cst_14 : f32 to vector<16x128xf32>
    %19 = arith.maximumf %17, %18 : vector<16x128xf32>
    %20 = arith.truncf %19 : vector<16x128xf32> to vector<16x128xbf16>
    %c0_15 = arith.constant 0 : index
    %c0_16 = arith.constant 0 : index
    %21 = vector.load %arg8[%c0_15, %c0_16] : memref<128x128xbf16, #tpu.memory_space<vmem>>, vector<128x128xbf16>
    %cst_17 = arith.constant dense<0.000000e+00> : vector<16x128xf32>
    %22 = tpu.matmul %20, %21, %cst_17 {dimension_numbers = #tpu.dot_dimension_numbers<[1], [0], [0], [1], [0, 0, 1, 1], [], []>} : vector<16x128xbf16>, vector<128x128xbf16>, vector<16x128xf32> -> vector<16x128xf32>
    %c0_18 = arith.constant 0 : index
    %c0_19 = arith.constant 0 : index
    %23 = vector.load %arg9[%c0_18, %c0_19] : memref<1x128xf32, #tpu.memory_space<vmem>>, vector<1x128xf32>
    %24 = vector.broadcast %23 : vector<1x128xf32> to vector<16x128xf32>
    %25 = arith.addf %22, %24 : vector<16x128xf32>
    %c0_20 = arith.constant 0 : index
    %c0_21 = arith.constant 0 : index
    %26 = vector.load %arg10[%c0_20, %c0_21] : memref<16x128xf32, #tpu.memory_space<vmem>>, vector<16x128xf32>
    tpu.vector_store %arg10[%c0_20, %c0_21], %25 {strides = array<i32>} : memref<16x128xf32, #tpu.memory_space<vmem>>, vector<16x128xf32>,
    return
  }
  func.func @transform_0(%arg0: i32) -> (i32, i32) {
    %c0_i32 = arith.constant 0 : i32
    %c0_i32_0 = arith.constant 0 : i32
    return %arg0, %c0_i32 : i32, i32
  }
  func.func @transform_1(%arg0: i32) -> (i32, i32) {
    %c0_i32 = arith.constant 0 : i32
    %c0_i32_0 = arith.constant 0 : i32
    return %arg0, %c0_i32 : i32, i32
  }
  func.func @transform_2(%arg0: i32) -> (i32, i32) {
    %c0_i32 = arith.constant 0 : i32
    %c0_i32_0 = arith.constant 0 : i32
    return %arg0, %c0_i32 : i32, i32
  }
  func.func @transform_3(%arg0: i32) -> (i32, i32) {
    %c0_i32 = arith.constant 0 : i32
    %c0_i32_0 = arith.constant 0 : i32
    %c0_i32_1 = arith.constant 0 : i32
    return %c0_i32, %c0_i32_0 : i32, i32
  }
  func.func @transform_4(%arg0: i32) -> (i32, i32) {
    %c0_i32 = arith.constant 0 : i32
    %c0_i32_0 = arith.constant 0 : i32
    %c0_i32_1 = arith.constant 0 : i32
    return %c0_i32, %c0_i32_0 : i32, i32
  }
  func.func @transform_5(%arg0: i32) -> (i32, i32) {
    %c0_i32 = arith.constant 0 : i32
    %c0_i32_0 = arith.constant 0 : i32
    %c0_i32_1 = arith.constant 0 : i32
    return %c0_i32, %c0_i32_0 : i32, i32
  }
  func.func @transform_6(%arg0: i32) -> (i32, i32) {
    %c0_i32 = arith.constant 0 : i32
    %c0_i32_0 = arith.constant 0 : i32
    %c0_i32_1 = arith.constant 0 : i32
    return %c0_i32, %c0_i32_0 : i32, i32
  }
  func.func @transform_7(%arg0: i32) -> (i32, i32) {
    %c0_i32 = arith.constant 0 : i32
    %c0_i32_0 = arith.constant 0 : i32
    %c0_i32_1 = arith.constant 0 : i32
    return %c0_i32, %c0_i32_0 : i32, i32
  }
  func.func @transform_8(%arg0: i32) -> (i32, i32) {
    %c0_i32 = arith.constant 0 : i32
    %c0_i32_0 = arith.constant 0 : i32
    %c0_i32_1 = arith.constant 0 : i32
    return %c0_i32, %c0_i32_0 : i32, i32
  }
  func.func @transform_9(%arg0: i32) -> (i32, i32) {
    %c0_i32 = arith.constant 0 : i32
    %c0_i32_0 = arith.constant 0 : i32
    return %arg0, %c0_i32 : i32, i32
  }
}

</mosaic_0001>

<llo_original>
// kernel: bond_break_gnn_forward.5
$region0: #{bond_break_gnn_forward.5}
  #allocation0 [shape = 'u32[]', space=smem, size = 0x4, offset = 0x4, fixed_abs, tag = 'smem constant byte address 0x4 - core index']
  #allocation1 [shape = 'u32[72,128]{1,0:T(1,128)}', space=vmem, size = 0x9000, scoped, tag = 'internal scratch']
  #allocation2 [shape = 'f32[128,128]{1,0:T(8,128)}', space=vmem, size = 0x10000, scoped, tag = 'scratch operand']
  %s0 = inlined_call_operand.vmem [shape: bf16[128,128], index: 0, kind: input, shape index: {}]
  %s1 = inlined_call_operand.vmem [shape: bf16[128,128], index: 1, kind: input, shape index: {}]
  %s2 = inlined_call_operand.vmem [shape: bf16[128,128], index: 2, kind: output, shape index: {}]
  %s3 = sld [smem:[#allocation0]]
  $region26: #{bond_break_gnn_forward.5} parent=0
    _
  %s5 = ssub.s32 1, %s3
  %s6 = scalar_select 0, %s5, %s3
  // Predicated region
  $region2: #{bond_break_gnn_forward.5} parent=0 // pred_check
    _
  $region3: #{bond_break_gnn_forward.5} parent=0 // pred_check_branch
    %8 = sbr.rel (0) target = $region5
  $region4: #{bond_break_gnn_forward.5} parent=0 // pred_region
    _
  $region5: #{bond_break_gnn_forward.5} parent=0 // pred_fallthru
    _
  // Predicated region
  $region6: #{bond_break_gnn_forward.5} parent=0 // pred_check
    _
  $region7: #{bond_break_gnn_forward.5} parent=0 // pred_check_branch
    %10 = sbr.rel (0) target = $region9
  $region8: #{bond_break_gnn_forward.5} parent=0 // pred_region
    _
  $region9: #{bond_break_gnn_forward.5} parent=0 // pred_fallthru
    _
  %p11 = scmp.eq.s32.totalorder 0, 0
  // Predicated region
  $region10: #{bond_break_gnn_forward.5} parent=0 // pred_check
    %p12 = pneg %p11
  $region11: #{bond_break_gnn_forward.5} parent=0 // pred_check_branch
    %14 = sbr.rel (%p12) target = $region13
  $region12: #{bond_break_gnn_forward.5} parent=0 // pred_region
    %15 = vst [vmem:[#allocation2] sm:$0xff] 0.0
    %16 = vst [vmem:[#allocation2 + $0x8] sm:$0xff] 0.0
    %17 = vst [vmem:[#allocation2 + $0x10] sm:$0xff] 0.0
    %18 = vst [vmem:[#allocation2 + $0x18] sm:$0xff] 0.0
    %19 = vst [vmem:[#allocation2 + $0x20] sm:$0xff] 0.0
    %20 = vst [vmem:[#allocation2 + $0x28] sm:$0xff] 0.0
    %21 = vst [vmem:[#allocation2 + $0x30] sm:$0xff] 0.0
    %22 = vst [vmem:[#allocation2 + $0x38] sm:$0xff] 0.0
    %23 = vst [vmem:[#allocation2 + $0x40] sm:$0xff] 0.0
    %24 = vst [vmem:[#allocation2 + $0x48] sm:$0xff] 0.0
    %25 = vst [vmem:[#allocation2 + $0x50] sm:$0xff] 0.0
    %26 = vst [vmem:[#allocation2 + $0x58] sm:$0xff] 0.0
    %27 = vst [vmem:[#allocation2 + $0x60] sm:$0xff] 0.0
    %28 = vst [vmem:[#allocation2 + $0x68] sm:$0xff] 0.0
    %29 = vst [vmem:[#allocation2 + $0x70] sm:$0xff] 0.0
    %30 = vst [vmem:[#allocation2 + $0x78] sm:$0xff] 0.0
  $region13: #{bond_break_gnn_forward.5} parent=0 // pred_fallthru
    _
  %v31 = vld [vmem:[#allocation2] sm:$0xff]
  %v32 = vld [vmem:[#allocation2 + $0x8] sm:$0xff]
  %v33 = vld [vmem:[#allocation2 + $0x10] sm:$0xff]
  %v34 = vld [vmem:[#allocation2 + $0x18] sm:$0xff]
  %v35 = vld [vmem:[#allocation2 + $0x20] sm:$0xff]
  %v36 = vld [vmem:[#allocation2 + $0x28] sm:$0xff]
  %v37 = vld [vmem:[#allocation2 + $0x30] sm:$0xff]
  %v38 = vld [vmem:[#allocation2 + $0x38] sm:$0xff]
  %v39 = vld [vmem:[#allocation2 + $0x40] sm:$0xff]
  %v40 = vld [vmem:[#allocation2 + $0x48] sm:$0xff]
  %v41 = vld [vmem:[#allocation2 + $0x50] sm:$0xff]
  %v42 = vld [vmem:[#allocation2 + $0x58] sm:$0xff]
  %v43 = vld [vmem:[#allocation2 + $0x60] sm:$0xff]
  %v44 = vld [vmem:[#allocation2 + $0x68] sm:$0xff]
  %v45 = vld [vmem:[#allocation2 + $0x70] sm:$0xff]
  %v46 = vld [vmem:[#allocation2 + $0x78] sm:$0xff]
  %v47 = vld [vmem:[%s0] sm:$0xf]
  %v48 = vld [vmem:[%s0 + $0x4] sm:$0xf]
  %v49 = vld [vmem:[%s0 + $0x8] sm:$0xf]
  %v50 = vld [vmem:[%s0 + $0xc] sm:$0xf]
  %v51 = vld [vmem:[%s0 + $0x10] sm:$0xf]
  %v52 = vld [vmem:[%s0 + $0x14] sm:$0xf]
  %v53 = vld [vmem:[%s0 + $0x18] sm:$0xf]
  %v54 = vld [vmem:[%s0 + $0x1c] sm:$0xf]
  %v55 = vld [vmem:[%s0 + $0x20] sm:$0xf]
  %v56 = vld [vmem:[%s0 + $0x24] sm:$0xf]
  %v57 = vld [vmem:[%s0 + $0x28] sm:$0xf]
  %v58 = vld [vmem:[%s0 + $0x2c] sm:$0xf]
  %v59 = vld [vmem:[%s0 + $0x30] sm:$0xf]
  %v60 = vld [vmem:[%s0 + $0x34] sm:$0xf]
  %v61 = vld [vmem:[%s0 + $0x38] sm:$0xf]
  %v62 = vld [vmem:[%s0 + $0x3c] sm:$0xf]
  %v63 = vld [vmem:[%s1] sm:$0xf]
  %v64 = vld [vmem:[%s1 + $0x4] sm:$0xf]
  %v65 = vld [vmem:[%s1 + $0x8] sm:$0xf]
  %v66 = vld [vmem:[%s1 + $0xc] sm:$0xf]
  %v67 = vld [vmem:[%s1 + $0x10] sm:$0xf]
  %v68 = vld [vmem:[%s1 + $0x14] sm:$0xf]
  %v69 = vld [vmem:[%s1 + $0x18] sm:$0xf]
  %v70 = vld [vmem:[%s1 + $0x1c] sm:$0xf]
  %v71 = vld [vmem:[%s1 + $0x20] sm:$0xf]
  %v72 = vld [vmem:[%s1 + $0x24] sm:$0xf]
  %v73 = vld [vmem:[%s1 + $0x28] sm:$0xf]
  %v74 = vld [vmem:[%s1 + $0x2c] sm:$0xf]
  %v75 = vld [vmem:[%s1 + $0x30] sm:$0xf]
  %v76 = vld [vmem:[%s1 + $0x34] sm:$0xf]
  %v77 = vld [vmem:[%s1 + $0x38] sm:$0xf]
  %v78 = vld [vmem:[%s1 + $0x3c] sm:$0xf]
  %v95 = vunpack.c.l.b16 %v47
  %v96 = vunpack.c.l.b16 %v48
  %v97 = vunpack.c.l.b16 %v49
  %v98 = vunpack.c.l.b16 %v50
  %v99 = vunpack.c.l.b16 %v51
  %v100 = vunpack.c.l.b16 %v52
  %v101 = vunpack.c.l.b16 %v53
  %v102 = vunpack.c.l.b16 %v54
  %v103 = vunpack.c.l.b16 %v55
  %v104 = vunpack.c.l.b16 %v56
  %v105 = vunpack.c.l.b16 %v57
  %v106 = vunpack.c.l.b16 %v58
  %v107 = vunpack.c.l.b16 %v59
  %v108 = vunpack.c.l.b16 %v60
  %v109 = vunpack.c.l.b16 %v61
  %v110 = vunpack.c.l.b16 %v62
  %v111 = vpack.c.b16 %v96, %v95
  %v112 = vpack.c.b16 %v98, %v97
  %v113 = vpack.c.b16 %v100, %v99
  %v114 = vpack.c.b16 %v102, %v101
  %v115 = vpack.c.b16 %v104, %v103
  %v116 = vpack.c.b16 %v106, %v105
  %v117 = vpack.c.b16 %v108, %v107
  %v118 = vpack.c.b16 %v110, %v109
  %v143 = vunpack.c.l.b16 %v63
  %v144 = vunpack.c.l.b16 %v64
  %v145 = vunpack.c.l.b16 %v65
  %v146 = vunpack.c.l.b16 %v66
  %v147 = vunpack.c.l.b16 %v67
  %v148 = vunpack.c.l.b16 %v68
  %v149 = vunpack.c.l.b16 %v69
  %v150 = vunpack.c.l.b16 %v70
  %v151 = vunpack.c.l.b16 %v71
  %v152 = vunpack.c.l.b16 %v72
  %v153 = vunpack.c.l.b16 %v73
  %v154 = vunpack.c.l.b16 %v74
  %v155 = vunpack.c.l.b16 %v75
  %v156 = vunpack.c.l.b16 %v76
  %v157 = vunpack.c.l.b16 %v77
  %v158 = vunpack.c.l.b16 %v78
  %v159 = vpack.c.b16 %v144, %v143
  %v160 = vpack.c.b16 %v146, %v145
  %v161 = vpack.c.b16 %v148, %v147
  %v162 = vpack.c.b16 %v150, %v149
  %v163 = vpack.c.b16 %v152, %v151
  %v164 = vpack.c.b16 %v154, %v153
  %v165 = vpack.c.b16 %v156, %v155
  %v166 = vpack.c.b16 %v158, %v157
  %175 = vmatpush.bf16.msra.mxu0 %v166
  %176 = vmatpush.bf16.msra.mxu0 %v165
  %177 = vmatpush.bf16.msra.mxu0 %v164
  %178 = vmatpush.bf16.msra.mxu0 %v163
  %179 = vmatpush.bf16.msra.mxu0 %v162
  %180 = vmatpush.bf16.msra.mxu0 %v161
  %181 = vmatpush.bf16.msra.mxu0 %v160
  %182 = vmatpush.bf16.msra.mxu0 %v159
  %183 = vmatmul.bf16.gmra.mxu0 %v111
  %v184 = vpop.f32.mrf.mxu0
  %v185 = vadd.f32 0.0, %v184
  %v186 = vpop.f32.mrf.mxu0
  %v187 = vadd.f32 0.0, %v186
  %188 = vmatmul.bf16.gmra.mxu0 %v112
  %v189 = vpop.f32.mrf.mxu0
  %v190 = vadd.f32 0.0, %v189
  %v191 = vpop.f32.mrf.mxu0
  %v192 = vadd.f32 0.0, %v191
  %193 = vmatmul.bf16.gmra.mxu0 %v113
  %v194 = vpop.f32.mrf.mxu0
  %v195 = vadd.f32 0.0, %v194
  %v196 = vpop.f32.mrf.mxu0
  %v197 = vadd.f32 0.0, %v196
  %198 = vmatmul.bf16.gmra.mxu0 %v114
  %v199 = vpop.f32.mrf.mxu0
  %v200 = vadd.f32 0.0, %v199
  %v201 = vpop.f32.mrf.mxu0
  %v202 = vadd.f32 0.0, %v201
  %203 = vmatmul.bf16.gmra.mxu0 %v115
  %v204 = vpop.f32.mrf.mxu0
  %v205 = vadd.f32 0.0, %v204
  %v206 = vpop.f32.mrf.mxu0
  %v207 = vadd.f32 0.0, %v206
  %208 = vmatmul.bf16.gmra.mxu0 %v116
  %v209 = vpop.f32.mrf.mxu0
  %v210 = vadd.f32 0.0, %v209
  %v211 = vpop.f32.mrf.mxu0
  %v212 = vadd.f32 0.0, %v211
  %213 = vmatmul.bf16.gmra.mxu0 %v117
  %v214 = vpop.f32.mrf.mxu0
  %v215 = vadd.f32 0.0, %v214
  %v216 = vpop.f32.mrf.mxu0
  %v217 = vadd.f32 0.0, %v216
  %218 = vmatmul.bf16.gmra.mxu0 %v118
  %v219 = vpop.f32.mrf.mxu0
  %v220 = vadd.f32 0.0, %v219
  %v221 = vpop.f32.mrf.mxu0
  %v222 = vadd.f32 0.0, %v221
  %223 = vdwg.mxu0
  %v224 = vadd.f32 %v31, %v185
  %v225 = vadd.f32 %v32, %v187
  %v226 = vadd.f32 %v33, %v190
  %v227 = vadd.f32 %v34, %v192
  %v228 = vadd.f32 %v35, %v195
  %v229 = vadd.f32 %v36, %v197
  %v230 = vadd.f32 %v37, %v200
  %v231 = vadd.f32 %v38, %v202
  %v232 = vadd.f32 %v39, %v205
  %v233 = vadd.f32 %v40, %v207
  %v234 = vadd.f32 %v41, %v210
  %v235 = vadd.f32 %v42, %v212
  %v236 = vadd.f32 %v43, %v215
  %v237 = vadd.f32 %v44, %v217
  %v238 = vadd.f32 %v45, %v220
  %v239 = vadd.f32 %v46, %v222
  %240 = vst [vmem:[#allocation2] sm:$0xff] %v224
  %241 = vst [vmem:[#allocation2 + $0x8] sm:$0xff] %v225
  %242 = vst [vmem:[#allocation2 + $0x10] sm:$0xff] %v226
  %243 = vst [vmem:[#allocation2 + $0x18] sm:$0xff] %v227
  %244 = vst [vmem:[#allocation2 + $0x20] sm:$0xff] %v228
  %245 = vst [vmem:[#allocation2 + $0x28] sm:$0xff] %v229
  %246 = vst [vmem:[#allocation2 + $0x30] sm:$0xff] %v230
  %247 = vst [vmem:[#allocation2 + $0x38] sm:$0xff] %v231
  %248 = vst [vmem:[#allocation2 + $0x40] sm:$0xff] %v232
  %249 = vst [vmem:[#allocation2 + $0x48] sm:$0xff] %v233
  %250 = vst [vmem:[#allocation2 + $0x50] sm:$0xff] %v234
  %251 = vst [vmem:[#allocation2 + $0x58] sm:$0xff] %v235
  %252 = vst [vmem:[#allocation2 + $0x60] sm:$0xff] %v236
  %253 = vst [vmem:[#allocation2 + $0x68] sm:$0xff] %v237
  %254 = vst [vmem:[#allocation2 + $0x70] sm:$0xff] %v238
  %255 = vst [vmem:[#allocation2 + $0x78] sm:$0xff] %v239
  // Predicated region
  $region14: #{bond_break_gnn_forward.5} parent=0 // pred_check
    %p256 = pneg %p11
  $region15: #{bond_break_gnn_forward.5} parent=0 // pred_check_branch
    %258 = sbr.rel (%p256) target = $region17
  $region16: #{bond_break_gnn_forward.5} parent=0 // pred_region
    %v259 = vld [vmem:[#allocation2] sm:$0xff]
    %v260 = vld [vmem:[#allocation2 + $0x8] sm:$0xff]
    %v261 = vld [vmem:[#allocation2 + $0x10] sm:$0xff]
    %v262 = vld [vmem:[#allocation2 + $0x18] sm:$0xff]
    %v263 = vld [vmem:[#allocation2 + $0x20] sm:$0xff]
    %v264 = vld [vmem:[#allocation2 + $0x28] sm:$0xff]
    %v265 = vld [vmem:[#allocation2 + $0x30] sm:$0xff]
    %v266 = vld [vmem:[#allocation2 + $0x38] sm:$0xff]
    %v267 = vld [vmem:[#allocation2 + $0x40] sm:$0xff]
    %v268 = vld [vmem:[#allocation2 + $0x48] sm:$0xff]
    %v269 = vld [vmem:[#allocation2 + $0x50] sm:$0xff]
    %v270 = vld [vmem:[#allocation2 + $0x58] sm:$0xff]
    %v271 = vld [vmem:[#allocation2 + $0x60] sm:$0xff]
    %v272 = vld [vmem:[#allocation2 + $0x68] sm:$0xff]
    %v273 = vld [vmem:[#allocation2 + $0x70] sm:$0xff]
    %v274 = vld [vmem:[#allocation2 + $0x78] sm:$0xff]
    %v275 = vpack.c.bf16 %v259, %v259
    %v276 = vpack.c.bf16 %v260, %v260
    %v277 = vpack.c.bf16 %v261, %v261
    %v278 = vpack.c.bf16 %v262, %v262
    %v279 = vpack.c.bf16 %v263, %v263
    %v280 = vpack.c.bf16 %v264, %v264
    %v281 = vpack.c.bf16 %v265, %v265
    %v282 = vpack.c.bf16 %v266, %v266
    %v283 = vpack.c.bf16 %v267, %v267
    %v284 = vpack.c.bf16 %v268, %v268
    %v285 = vpack.c.bf16 %v269, %v269
    %v286 = vpack.c.bf16 %v270, %v270
    %v287 = vpack.c.bf16 %v271, %v271
    %v288 = vpack.c.bf16 %v272, %v272
    %v289 = vpack.c.bf16 %v273, %v273
    %v290 = vpack.c.bf16 %v274, %v274
    %291 = vst [vmem:[%s2] sm:$0xf] %v275
    %292 = vst [vmem:[%s2 + $0x4] sm:$0xf] %v276
    %293 = vst [vmem:[%s2 + $0x8] sm:$0xf] %v277
    %294 = vst [vmem:[%s2 + $0xc] sm:$0xf] %v278
    %295 = vst [vmem:[%s2 + $0x10] sm:$0xf] %v279
    %296 = vst [vmem:[%s2 + $0x14] sm:$0xf] %v280
    %297 = vst [vmem:[%s2 + $0x18] sm:$0xf] %v281
    %298 = vst [vmem:[%s2 + $0x1c] sm:$0xf] %v282
    %299 = vst [vmem:[%s2 + $0x20] sm:$0xf] %v283
    %300 = vst [vmem:[%s2 + $0x24] sm:$0xf] %v284
    %301 = vst [vmem:[%s2 + $0x28] sm:$0xf] %v285
    %302 = vst [vmem:[%s2 + $0x2c] sm:$0xf] %v286
    %303 = vst [vmem:[%s2 + $0x30] sm:$0xf] %v287
    %304 = vst [vmem:[%s2 + $0x34] sm:$0xf] %v288
    %305 = vst [vmem:[%s2 + $0x38] sm:$0xf] %v289
    %306 = vst [vmem:[%s2 + $0x3c] sm:$0xf] %v290
  $region17: #{bond_break_gnn_forward.5} parent=0 // pred_fallthru
    _
  // Predicated region
  $region18: #{bond_break_gnn_forward.5} parent=0 // pred_check
    _
  $region19: #{bond_break_gnn_forward.5} parent=0 // pred_check_branch
    %308 = sbr.rel (0) target = $region21
  $region20: #{bond_break_gnn_forward.5} parent=0 // pred_region
    _
  $region21: #{bond_break_gnn_forward.5} parent=0 // pred_fallthru
    _
  // Predicated region
  $region22: #{bond_break_gnn_forward.5} parent=0 // pred_check
    _
  $region23: #{bond_break_gnn_forward.5} parent=0 // pred_check_branch
    %310 = sbr.rel (0) target = $region25
  $region24: #{bond_break_gnn_forward.5} parent=0 // pred_region
    _
  $region25: #{bond_break_gnn_forward.5} parent=0 // pred_fallthru
    _

// kernel: bond_break_gnn_forward.6
$region0: #{bond_break_gnn_forward.6}
  #allocation0 [shape = 'u32[]', space=smem, size = 0x4, offset = 0x4, fixed_abs, tag = 'smem constant byte address 0x4 - core index']
  #allocation1 [shape = 'u32[72,128]{1,0:T(1,128)}', space=vmem, size = 0x9000, scoped, tag = 'internal scratch']
  #allocation2 [shape = 'f32[128,128]{1,0:T(8,128)}', space=vmem, size = 0x10000, scoped, tag = 'scratch operand']
  %s0 = inlined_call_operand.vmem [shape: bf16[128,128], index: 0, kind: input, shape index: {}]
  %s1 = inlined_call_operand.vmem [shape: bf16[128,128], index: 1, kind: input, shape index: {}]
  %s2 = inlined_call_operand.vmem [shape: f32[1,128], index: 2, kind: input, shape index: {}]
  %s3 = inlined_call_operand.vmem [shape: bf16[128,128], index: 3, kind: output, shape index: {}]
  %s4 = sld [smem:[#allocation0]]
  $region30: #{bond_break_gnn_forward.6} parent=0
    _
  %s6 = ssub.s32 1, %s4
  %s7 = scalar_select 0, %s6, %s4
  // Predicated region
  $region2: #{bond_break_gnn_forward.6} parent=0 // pred_check
    _
  $region3: #{bond_break_gnn_forward.6} parent=0 // pred_check_branch
    %9 = sbr.rel (0) target = $region5
  $region4: #{bond_break_gnn_forward.6} parent=0 // pred_region
    _
  $region5: #{bond_break_gnn_forward.6} parent=0 // pred_fallthru
    _
  // Predicated region
  $region6: #{bond_break_gnn_forward.6} parent=0 // pred_check
    _
  $region7: #{bond_break_gnn_forward.6} parent=0 // pred_check_branch
    %11 = sbr.rel (0) target = $region9
  $region8: #{bond_break_gnn_forward.6} parent=0 // pred_region
    _
  $region9: #{bond_break_gnn_forward.6} parent=0 // pred_fallthru
    _
  // Predicated region
  $region10: #{bond_break_gnn_forward.6} parent=0 // pred_check
    _
  $region11: #{bond_break_gnn_forward.6} parent=0 // pred_check_branch
    %13 = sbr.rel (0) target = $region13
  $region12: #{bond_break_gnn_forward.6} parent=0 // pred_region
    _
  $region13: #{bond_break_gnn_forward.6} parent=0 // pred_fallthru
    _
  %p14 = scmp.eq.s32.totalorder 0, 0
  // Predicated region
  $region14: #{bond_break_gnn_forward.6} parent=0 // pred_check
    %p15 = pneg %p14
  $region15: #{bond_break_gnn_forward.6} parent=0 // pred_check_branch
    %17 = sbr.rel (%p15) target = $region17
  $region16: #{bond_break_gnn_forward.6} parent=0 // pred_region
    %18 = vst [vmem:[#allocation2] sm:$0xff] 0.0
    %19 = vst [vmem:[#allocation2 + $0x8] sm:$0xff] 0.0
    %20 = vst [vmem:[#allocation2 + $0x10] sm:$0xff] 0.0
    %21 = vst [vmem:[#allocation2 + $0x18] sm:$0xff] 0.0
    %22 = vst [vmem:[#allocation2 + $0x20] sm:$0xff] 0.0
    %23 = vst [vmem:[#allocation2 + $0x28] sm:$0xff] 0.0
    %24 = vst [vmem:[#allocation2 + $0x30] sm:$0xff] 0.0
    %25 = vst [vmem:[#allocation2 + $0x38] sm:$0xff] 0.0
    %26 = vst [vmem:[#allocation2 + $0x40] sm:$0xff] 0.0
    %27 = vst [vmem:[#allocation2 + $0x48] sm:$0xff] 0.0
    %28 = vst [vmem:[#allocation2 + $0x50] sm:$0xff] 0.0
    %29 = vst [vmem:[#allocation2 + $0x58] sm:$0xff] 0.0
    %30 = vst [vmem:[#allocation2 + $0x60] sm:$0xff] 0.0
    %31 = vst [vmem:[#allocation2 + $0x68] sm:$0xff] 0.0
    %32 = vst [vmem:[#allocation2 + $0x70] sm:$0xff] 0.0
    %33 = vst [vmem:[#allocation2 + $0x78] sm:$0xff] 0.0
  $region17: #{bond_break_gnn_forward.6} parent=0 // pred_fallthru
    _
  %v34 = vld [vmem:[#allocation2] sm:$0xff]
  %v35 = vld [vmem:[#allocation2 + $0x8] sm:$0xff]
  %v36 = vld [vmem:[#allocation2 + $0x10] sm:$0xff]
  %v37 = vld [vmem:[#allocation2 + $0x18] sm:$0xff]
  %v38 = vld [vmem:[#allocation2 + $0x20] sm:$0xff]
  %v39 = vld [vmem:[#allocation2 + $0x28] sm:$0xff]
  %v40 = vld [vmem:[#allocation2 + $0x30] sm:$0xff]
  %v41 = vld [vmem:[#allocation2 + $0x38] sm:$0xff]
  %v42 = vld [vmem:[#allocation2 + $0x40] sm:$0xff]
  %v43 = vld [vmem:[#allocation2 + $0x48] sm:$0xff]
  %v44 = vld [vmem:[#allocation2 + $0x50] sm:$0xff]
  %v45 = vld [vmem:[#allocation2 + $0x58] sm:$0xff]
  %v46 = vld [vmem:[#allocation2 + $0x60] sm:$0xff]
  %v47 = vld [vmem:[#allocation2 + $0x68] sm:$0xff]
  %v48 = vld [vmem:[#allocation2 + $0x70] sm:$0xff]
  %v49 = vld [vmem:[#allocation2 + $0x78] sm:$0xff]
  %v50 = vld [vmem:[%s0] sm:$0xf]
  %v51 = vld [vmem:[%s0 + $0x4] sm:$0xf]
  %v52 = vld [vmem:[%s0 + $0x8] sm:$0xf]
  %v53 = vld [vmem:[%s0 + $0xc] sm:$0xf]
  %v54 = vld [vmem:[%s0 + $0x10] sm:$0xf]
  %v55 = vld [vmem:[%s0 + $0x14] sm:$0xf]
  %v56 = vld [vmem:[%s0 + $0x18] sm:$0xf]
  %v57 = vld [vmem:[%s0 + $0x1c] sm:$0xf]
  %v58 = vld [vmem:[%s0 + $0x20] sm:$0xf]
  %v59 = vld [vmem:[%s0 + $0x24] sm:$0xf]
  %v60 = vld [vmem:[%s0 + $0x28] sm:$0xf]
  %v61 = vld [vmem:[%s0 + $0x2c] sm:$0xf]
  %v62 = vld [vmem:[%s0 + $0x30] sm:$0xf]
  %v63 = vld [vmem:[%s0 + $0x34] sm:$0xf]
  %v64 = vld [vmem:[%s0 + $0x38] sm:$0xf]
  %v65 = vld [vmem:[%s0 + $0x3c] sm:$0xf]
  %v66 = vld [vmem:[%s1] sm:$0xf]
  %v67 = vld [vmem:[%s1 + $0x4] sm:$0xf]
  %v68 = vld [vmem:[%s1 + $0x8] sm:$0xf]
  %v69 = vld [vmem:[%s1 + $0xc] sm:$0xf]
  %v70 = vld [vmem:[%s1 + $0x10] sm:$0xf]
  %v71 = vld [vmem:[%s1 + $0x14] sm:$0xf]
  %v72 = vld [vmem:[%s1 + $0x18] sm:$0xf]
  %v73 = vld [vmem:[%s1 + $0x1c] sm:$0xf]
  %v74 = vld [vmem:[%s1 + $0x20] sm:$0xf]
  %v75 = vld [vmem:[%s1 + $0x24] sm:$0xf]
  %v76 = vld [vmem:[%s1 + $0x28] sm:$0xf]
  %v77 = vld [vmem:[%s1 + $0x2c] sm:$0xf]
  %v78 = vld [vmem:[%s1 + $0x30] sm:$0xf]
  %v79 = vld [vmem:[%s1 + $0x34] sm:$0xf]
  %v80 = vld [vmem:[%s1 + $0x38] sm:$0xf]
  %v81 = vld [vmem:[%s1 + $0x3c] sm:$0xf]
  %v98 = vunpack.c.l.b16 %v50
  %v99 = vunpack.c.l.b16 %v51
  %v100 = vunpack.c.l.b16 %v52
  %v101 = vunpack.c.l.b16 %v53
  %v102 = vunpack.c.l.b16 %v54
  %v103 = vunpack.c.l.b16 %v55
  %v104 = vunpack.c.l.b16 %v56
  %v105 = vunpack.c.l.b16 %v57
  %v106 = vunpack.c.l.b16 %v58
  %v107 = vunpack.c.l.b16 %v59
  %v108 = vunpack.c.l.b16 %v60
  %v109 = vunpack.c.l.b16 %v61
  %v110 = vunpack.c.l.b16 %v62
  %v111 = vunpack.c.l.b16 %v63
  %v112 = vunpack.c.l.b16 %v64
  %v113 = vunpack.c.l.b16 %v65
  %v114 = vpack.c.b16 %v99, %v98
  %v115 = vpack.c.b16 %v101, %v100
  %v116 = vpack.c.b16 %v103, %v102
  %v117 = vpack.c.b16 %v105, %v104
  %v118 = vpack.c.b16 %v107, %v106
  %v119 = vpack.c.b16 %v109, %v108
  %v120 = vpack.c.b16 %v111, %v110
  %v121 = vpack.c.b16 %v113, %v112
  %v146 = vunpack.c.l.b16 %v66
  %v147 = vunpack.c.l.b16 %v67
  %v148 = vunpack.c.l.b16 %v68
  %v149 = vunpack.c.l.b16 %v69
  %v150 = vunpack.c.l.b16 %v70
  %v151 = vunpack.c.l.b16 %v71
  %v152 = vunpack.c.l.b16 %v72
  %v153 = vunpack.c.l.b16 %v73
  %v154 = vunpack.c.l.b16 %v74
  %v155 = vunpack.c.l.b16 %v75
  %v156 = vunpack.c.l.b16 %v76
  %v157 = vunpack.c.l.b16 %v77
  %v158 = vunpack.c.l.b16 %v78
  %v159 = vunpack.c.l.b16 %v79
  %v160 = vunpack.c.l.b16 %v80
  %v161 = vunpack.c.l.b16 %v81
  %v162 = vpack.c.b16 %v147, %v146
  %v163 = vpack.c.b16 %v149, %v148
  %v164 = vpack.c.b16 %v151, %v150
  %v165 = vpack.c.b16 %v153, %v152
  %v166 = vpack.c.b16 %v155, %v154
  %v167 = vpack.c.b16 %v157, %v156
  %v168 = vpack.c.b16 %v159, %v158
  %v169 = vpack.c.b16 %v161, %v160
  %178 = vmatpush.bf16.msra.mxu0 %v169
  %179 = vmatpush.bf16.msra.mxu0 %v168
  %180 = vmatpush.bf16.msra.mxu0 %v167
  %181 = vmatpush.bf16.msra.mxu0 %v166
  %182 = vmatpush.bf16.msra.mxu0 %v165
  %183 = vmatpush.bf16.msra.mxu0 %v164
  %184 = vmatpush.bf16.msra.mxu0 %v163
  %185 = vmatpush.bf16.msra.mxu0 %v162
  %186 = vmatmul.bf16.gmra.mxu0 %v114
  %v187 = vpop.f32.mrf.mxu0
  %v188 = vadd.f32 0.0, %v187
  %v189 = vpop.f32.mrf.mxu0
  %v190 = vadd.f32 0.0, %v189
  %191 = vmatmul.bf16.gmra.mxu0 %v115
  %v192 = vpop.f32.mrf.mxu0
  %v193 = vadd.f32 0.0, %v192
  %v194 = vpop.f32.mrf.mxu0
  %v195 = vadd.f32 0.0, %v194
  %196 = vmatmul.bf16.gmra.mxu0 %v116
  %v197 = vpop.f32.mrf.mxu0
  %v198 = vadd.f32 0.0, %v197
  %v199 = vpop.f32.mrf.mxu0
  %v200 = vadd.f32 0.0, %v199
  %201 = vmatmul.bf16.gmra.mxu0 %v117
  %v202 = vpop.f32.mrf.mxu0
  %v203 = vadd.f32 0.0, %v202
  %v204 = vpop.f32.mrf.mxu0
  %v205 = vadd.f32 0.0, %v204
  %206 = vmatmul.bf16.gmra.mxu0 %v118
  %v207 = vpop.f32.mrf.mxu0
  %v208 = vadd.f32 0.0, %v207
  %v209 = vpop.f32.mrf.mxu0
  %v210 = vadd.f32 0.0, %v209
  %211 = vmatmul.bf16.gmra.mxu0 %v119
  %v212 = vpop.f32.mrf.mxu0
  %v213 = vadd.f32 0.0, %v212
  %v214 = vpop.f32.mrf.mxu0
  %v215 = vadd.f32 0.0, %v214
  %216 = vmatmul.bf16.gmra.mxu0 %v120
  %v217 = vpop.f32.mrf.mxu0
  %v218 = vadd.f32 0.0, %v217
  %v219 = vpop.f32.mrf.mxu0
  %v220 = vadd.f32 0.0, %v219
  %221 = vmatmul.bf16.gmra.mxu0 %v121
  %v222 = vpop.f32.mrf.mxu0
  %v223 = vadd.f32 0.0, %v222
  %v224 = vpop.f32.mrf.mxu0
  %v225 = vadd.f32 0.0, %v224
  %226 = vdwg.mxu0
  %v227 = vadd.f32 %v34, %v188
  %v228 = vadd.f32 %v35, %v190
  %v229 = vadd.f32 %v36, %v193
  %v230 = vadd.f32 %v37, %v195
  %v231 = vadd.f32 %v38, %v198
  %v232 = vadd.f32 %v39, %v200
  %v233 = vadd.f32 %v40, %v203
  %v234 = vadd.f32 %v41, %v205
  %v235 = vadd.f32 %v42, %v208
  %v236 = vadd.f32 %v43, %v210
  %v237 = vadd.f32 %v44, %v213
  %v238 = vadd.f32 %v45, %v215
  %v239 = vadd.f32 %v46, %v218
  %v240 = vadd.f32 %v47, %v220
  %v241 = vadd.f32 %v48, %v223
  %v242 = vadd.f32 %v49, %v225
  %243 = vst [vmem:[#allocation2] sm:$0xff] %v227
  %244 = vst [vmem:[#allocation2 + $0x8] sm:$0xff] %v228
  %245 = vst [vmem:[#allocation2 + $0x10] sm:$0xff] %v229
  %246 = vst [vmem:[#allocation2 + $0x18] sm:$0xff] %v230
  %247 = vst [vmem:[#allocation2 + $0x20] sm:$0xff] %v231
  %248 = vst [vmem:[#allocation2 + $0x28] sm:$0xff] %v232
  %249 = vst [vmem:[#allocation2 + $0x30] sm:$0xff] %v233
  %250 = vst [vmem:[#allocation2 + $0x38] sm:$0xff] %v234
  %251 = vst [vmem:[#allocation2 + $0x40] sm:$0xff] %v235
  %252 = vst [vmem:[#allocation2 + $0x48] sm:$0xff] %v236
  %253 = vst [vmem:[#allocation2 + $0x50] sm:$0xff] %v237
  %254 = vst [vmem:[#allocation2 + $0x58] sm:$0xff] %v238
  %255 = vst [vmem:[#allocation2 + $0x60] sm:$0xff] %v239
  %256 = vst [vmem:[#allocation2 + $0x68] sm:$0xff] %v240
  %257 = vst [vmem:[#allocation2 + $0x70] sm:$0xff] %v241
  %258 = vst [vmem:[#allocation2 + $0x78] sm:$0xff] %v242
  // Predicated region
  $region18: #{bond_break_gnn_forward.6} parent=0 // pred_check
    %p259 = pneg %p14
  $region19: #{bond_break_gnn_forward.6} parent=0 // pred_check_branch
    %261 = sbr.rel (%p259) target = $region21
  $region20: #{bond_break_gnn_forward.6} parent=0 // pred_region
    %v262 = vld [vmem:[#allocation2] sm:$0xff]
    %v263 = vld [vmem:[#allocation2 + $0x8] sm:$0xff]
    %v264 = vld [vmem:[#allocation2 + $0x10] sm:$0xff]
    %v265 = vld [vmem:[#allocation2 + $0x18] sm:$0xff]
    %v266 = vld [vmem:[#allocation2 + $0x20] sm:$0xff]
    %v267 = vld [vmem:[#allocation2 + $0x28] sm:$0xff]
    %v268 = vld [vmem:[#allocation2 + $0x30] sm:$0xff]
    %v269 = vld [vmem:[#allocation2 + $0x38] sm:$0xff]
    %v270 = vld [vmem:[#allocation2 + $0x40] sm:$0xff]
    %v271 = vld [vmem:[#allocation2 + $0x48] sm:$0xff]
    %v272 = vld [vmem:[#allocation2 + $0x50] sm:$0xff]
    %v273 = vld [vmem:[#allocation2 + $0x58] sm:$0xff]
    %v274 = vld [vmem:[#allocation2 + $0x60] sm:$0xff]
    %v275 = vld [vmem:[#allocation2 + $0x68] sm:$0xff]
    %v276 = vld [vmem:[#allocation2 + $0x70] sm:$0xff]
    %v277 = vld [vmem:[#allocation2 + $0x78] sm:$0xff]
    %v278 = vld [vmem:[%s2] sm:$0x1]
    %v280 = vperm.slane %v278, 0
    %v282 = vadd.f32 %v262, %v280
    %v283 = vadd.f32 %v263, %v280
    %v284 = vadd.f32 %v264, %v280
    %v285 = vadd.f32 %v265, %v280
    %v286 = vadd.f32 %v266, %v280
    %v287 = vadd.f32 %v267, %v280
    %v288 = vadd.f32 %v268, %v280
    %v289 = vadd.f32 %v269, %v280
    %v290 = vadd.f32 %v270, %v280
    %v291 = vadd.f32 %v271, %v280
    %v292 = vadd.f32 %v272, %v280
    %v293 = vadd.f32 %v273, %v280
    %v294 = vadd.f32 %v274, %v280
    %v295 = vadd.f32 %v275, %v280
    %v296 = vadd.f32 %v276, %v280
    %v297 = vadd.f32 %v277, %v280
    %v298 = vmax.f32 %v282, 0.0
    %v299 = vmax.f32 %v283, 0.0
    %v300 = vmax.f32 %v284, 0.0
    %v301 = vmax.f32 %v285, 0.0
    %v302 = vmax.f32 %v286, 0.0
    %v303 = vmax.f32 %v287, 0.0
    %v304 = vmax.f32 %v288, 0.0
    %v305 = vmax.f32 %v289, 0.0
    %v306 = vmax.f32 %v290, 0.0
    %v307 = vmax.f32 %v291, 0.0
    %v308 = vmax.f32 %v292, 0.0
    %v309 = vmax.f32 %v293, 0.0
    %v310 = vmax.f32 %v294, 0.0
    %v311 = vmax.f32 %v295, 0.0
    %v312 = vmax.f32 %v296, 0.0
    %v313 = vmax.f32 %v297, 0.0
    %v314 = vpack.c.bf16 %v298, %v298
    %v315 = vpack.c.bf16 %v299, %v299
    %v316 = vpack.c.bf16 %v300, %v300
    %v317 = vpack.c.bf16 %v301, %v301
    %v318 = vpack.c.bf16 %v302, %v302
    %v319 = vpack.c.bf16 %v303, %v303
    %v320 = vpack.c.bf16 %v304, %v304
    %v321 = vpack.c.bf16 %v305, %v305
    %v322 = vpack.c.bf16 %v306, %v306
    %v323 = vpack.c.bf16 %v307, %v307
    %v324 = vpack.c.bf16 %v308, %v308
    %v325 = vpack.c.bf16 %v309, %v309
    %v326 = vpack.c.bf16 %v310, %v310
    %v327 = vpack.c.bf16 %v311, %v311
    %v328 = vpack.c.bf16 %v312, %v312
    %v329 = vpack.c.bf16 %v313, %v313
    %330 = vst [vmem:[%s3] sm:$0xf] %v314
    %331 = vst [vmem:[%s3 + $0x4] sm:$0xf] %v315
    %332 = vst [vmem:[%s3 + $0x8] sm:$0xf] %v316
    %333 = vst [vmem:[%s3 + $0xc] sm:$0xf] %v317
    %334 = vst [vmem:[%s3 + $0x10] sm:$0xf] %v318
    %335 = vst [vmem:[%s3 + $0x14] sm:$0xf] %v319
    %336 = vst [vmem:[%s3 + $0x18] sm:$0xf] %v320
    %337 = vst [vmem:[%s3 + $0x1c] sm:$0xf] %v321
    %338 = vst [vmem:[%s3 + $0x20] sm:$0xf] %v322
    %339 = vst [vmem:[%s3 + $0x24] sm:$0xf] %v323
    %340 = vst [vmem:[%s3 + $0x28] sm:$0xf] %v324
    %341 = vst [vmem:[%s3 + $0x2c] sm:$0xf] %v325
    %342 = vst [vmem:[%s3 + $0x30] sm:$0xf] %v326
    %343 = vst [vmem:[%s3 + $0x34] sm:$0xf] %v327
    %344 = vst [vmem:[%s3 + $0x38] sm:$0xf] %v328
    %345 = vst [vmem:[%s3 + $0x3c] sm:$0xf] %v329
  $region21: #{bond_break_gnn_forward.6} parent=0 // pred_fallthru
    _
  // Predicated region
  $region22: #{bond_break_gnn_forward.6} parent=0 // pred_check
    _
  $region23: #{bond_break_gnn_forward.6} parent=0 // pred_check_branch
    %347 = sbr.rel (0) target = $region25
  $region24: #{bond_break_gnn_forward.6} parent=0 // pred_region
    _
  $region25: #{bond_break_gnn_forward.6} parent=0 // pred_fallthru
    _
  // Predicated region
  $region26: #{bond_break_gnn_forward.6} parent=0 // pred_check
    _
  $region27: #{bond_break_gnn_forward.6} parent=0 // pred_check_branch
    %349 = sbr.rel (0) target = $region29
  $region28: #{bond_break_gnn_forward.6} parent=0 // pred_region
    _
  $region29: #{bond_break_gnn_forward.6} parent=0 // pred_fallthru
    _

// kernel: bond_break_gnn_forward.9
$region0: #{bond_break_gnn_forward.9}
  #allocation0 [shape = 'u32[]', space=smem, size = 0x4, offset = 0x4, fixed_abs, tag = 'smem constant byte address 0x4 - core index']
  #allocation1 [shape = 'u32[72,128]{1,0:T(1,128)}', space=vmem, size = 0x9000, scoped, tag = 'internal scratch']
  %s0 = inlined_call_operand.vmem [shape: bf16[16,128], index: 0, kind: input, shape index: {}]
  %s1 = inlined_call_operand.vmem [shape: bf16[16,128], index: 1, kind: input, shape index: {}]
  %s2 = inlined_call_operand.vmem [shape: f32[16,1], index: 2, kind: input, shape index: {}]
  %s3 = inlined_call_operand.vmem [shape: bf16[128,128], index: 3, kind: input, shape index: {}]
  %s4 = inlined_call_operand.vmem [shape: bf16[128,128], index: 4, kind: input, shape index: {}]
  %s5 = inlined_call_operand.vmem [shape: f32[1,128], index: 5, kind: input, shape index: {}]
  %s6 = inlined_call_operand.vmem [shape: f32[1,128], index: 6, kind: input, shape index: {}]
  %s7 = inlined_call_operand.vmem [shape: bf16[128,128], index: 7, kind: input, shape index: {}]
  %s8 = inlined_call_operand.vmem [shape: f32[1,128], index: 8, kind: input, shape index: {}]
  %s9 = inlined_call_operand.vmem [shape: f32[16,128], index: 9, kind: output, shape index: {}]
  %s10 = sld [smem:[#allocation0]]
  $region46: #{bond_break_gnn_forward.9} parent=0
    _
  %s12 = ssub.s32 1, %s10
  %s13 = scalar_select 0, %s12, %s10
  // Predicated region
  $region2: #{bond_break_gnn_forward.9} parent=0 // pred_check
    _
  $region3: #{bond_break_gnn_forward.9} parent=0 // pred_check_branch
    %15 = sbr.rel (0) target = $region5
  $region4: #{bond_break_gnn_forward.9} parent=0 // pred_region
    _
  $region5: #{bond_break_gnn_forward.9} parent=0 // pred_fallthru
    _
  // Predicated region
  $region6: #{bond_break_gnn_forward.9} parent=0 // pred_check
    _
  $region7: #{bond_break_gnn_forward.9} parent=0 // pred_check_branch
    %17 = sbr.rel (0) target = $region9
  $region8: #{bond_break_gnn_forward.9} parent=0 // pred_region
    _
  $region9: #{bond_break_gnn_forward.9} parent=0 // pred_fallthru
    _
  // Predicated region
  $region10: #{bond_break_gnn_forward.9} parent=0 // pred_check
    _
  $region11: #{bond_break_gnn_forward.9} parent=0 // pred_check_branch
    %19 = sbr.rel (0) target = $region13
  $region12: #{bond_break_gnn_forward.9} parent=0 // pred_region
    _
  $region13: #{bond_break_gnn_forward.9} parent=0 // pred_fallthru
    _
  // Predicated region
  $region14: #{bond_break_gnn_forward.9} parent=0 // pred_check
    _
  $region15: #{bond_break_gnn_forward.9} parent=0 // pred_check_branch
    %21 = sbr.rel (0) target = $region17
  $region16: #{bond_break_gnn_forward.9} parent=0 // pred_region
    _
  $region17: #{bond_break_gnn_forward.9} parent=0 // pred_fallthru
    _
  // Predicated region
  $region18: #{bond_break_gnn_forward.9} parent=0 // pred_check
    _
  $region19: #{bond_break_gnn_forward.9} parent=0 // pred_check_branch
    %23 = sbr.rel (0) target = $region21
  $region20: #{bond_break_gnn_forward.9} parent=0 // pred_region
    _
  $region21: #{bond_break_gnn_forward.9} parent=0 // pred_fallthru
    _
  // Predicated region
  $region22: #{bond_break_gnn_forward.9} parent=0 // pred_check
    _
  $region23: #{bond_break_gnn_forward.9} parent=0 // pred_check_branch
    %25 = sbr.rel (0) target = $region25
  $region24: #{bond_break_gnn_forward.9} parent=0 // pred_region
    _
  $region25: #{bond_break_gnn_forward.9} parent=0 // pred_fallthru
    _
  // Predicated region
  $region26: #{bond_break_gnn_forward.9} parent=0 // pred_check
    _
  $region27: #{bond_break_gnn_forward.9} parent=0 // pred_check_branch
    %27 = sbr.rel (0) target = $region29
  $region28: #{bond_break_gnn_forward.9} parent=0 // pred_region
    _
  $region29: #{bond_break_gnn_forward.9} parent=0 // pred_fallthru
    _
  // Predicated region
  $region30: #{bond_break_gnn_forward.9} parent=0 // pred_check
    _
  $region31: #{bond_break_gnn_forward.9} parent=0 // pred_check_branch
    %29 = sbr.rel (0) target = $region33
  $region32: #{bond_break_gnn_forward.9} parent=0 // pred_region
    _
  $region33: #{bond_break_gnn_forward.9} parent=0 // pred_fallthru
    _
  // Predicated region
  $region34: #{bond_break_gnn_forward.9} parent=0 // pred_check
    _
  $region35: #{bond_break_gnn_forward.9} parent=0 // pred_check_branch
    %31 = sbr.rel (0) target = $region37
  $region36: #{bond_break_gnn_forward.9} parent=0 // pred_region
    _
  $region37: #{bond_break_gnn_forward.9} parent=0 // pred_fallthru
    _
  %v32 = vld [vmem:[%s0] sm:$0xf]
  %v33 = vld [vmem:[%s0 + $0x4] sm:$0xf]
  %v34 = vld [vmem:[%s3] sm:$0xf]
  %v35 = vld [vmem:[%s3 + $0x4] sm:$0xf]
  %v36 = vld [vmem:[%s3 + $0x8] sm:$0xf]
  %v37 = vld [vmem:[%s3 + $0xc] sm:$0xf]
  %v38 = vld [vmem:[%s3 + $0x10] sm:$0xf]
  %v39 = vld [vmem:[%s3 + $0x14] sm:$0xf]
  %v40 = vld [vmem:[%s3 + $0x18] sm:$0xf]
  %v41 = vld [vmem:[%s3 + $0x1c] sm:$0xf]
  %v42 = vld [vmem:[%s3 + $0x20] sm:$0xf]
  %v43 = vld [vmem:[%s3 + $0x24] sm:$0xf]
  %v44 = vld [vmem:[%s3 + $0x28] sm:$0xf]
  %v45 = vld [vmem:[%s3 + $0x2c] sm:$0xf]
  %v46 = vld [vmem:[%s3 + $0x30] sm:$0xf]
  %v47 = vld [vmem:[%s3 + $0x34] sm:$0xf]
  %v48 = vld [vmem:[%s3 + $0x38] sm:$0xf]
  %v49 = vld [vmem:[%s3 + $0x3c] sm:$0xf]
  %v50 = vld [vmem:[%s1] sm:$0xf]
  %v51 = vld [vmem:[%s1 + $0x4] sm:$0xf]
  %v52 = vld [vmem:[%s4] sm:$0xf]
  %v53 = vld [vmem:[%s4 + $0x4] sm:$0xf]
  %v54 = vld [vmem:[%s4 + $0x8] sm:$0xf]
  %v55 = vld [vmem:[%s4 + $0xc] sm:$0xf]
  %v56 = vld [vmem:[%s4 + $0x10] sm:$0xf]
  %v57 = vld [vmem:[%s4 + $0x14] sm:$0xf]
  %v58 = vld [vmem:[%s4 + $0x18] sm:$0xf]
  %v59 = vld [vmem:[%s4 + $0x1c] sm:$0xf]
  %v60 = vld [vmem:[%s4 + $0x20] sm:$0xf]
  %v61 = vld [vmem:[%s4 + $0x24] sm:$0xf]
  %v62 = vld [vmem:[%s4 + $0x28] sm:$0xf]
  %v63 = vld [vmem:[%s4 + $0x2c] sm:$0xf]
  %v64 = vld [vmem:[%s4 + $0x30] sm:$0xf]
  %v65 = vld [vmem:[%s4 + $0x34] sm:$0xf]
  %v66 = vld [vmem:[%s4 + $0x38] sm:$0xf]
  %v67 = vld [vmem:[%s4 + $0x3c] sm:$0xf]
  %v70 = vunpack.c.l.b16 %v50
  %v71 = vunpack.c.l.b16 %v51
  %v72 = vpack.c.b16 %v71, %v70
  %v90 = vunpack.c.l.b16 %v52
  %v91 = vunpack.c.l.b16 %v53
  %v92 = vunpack.c.l.b16 %v54
  %v93 = vunpack.c.l.b16 %v55
  %v94 = vunpack.c.l.b16 %v56
  %v95 = vunpack.c.l.b16 %v57
  %v96 = vunpack.c.l.b16 %v58
  %v97 = vunpack.c.l.b16 %v59
  %v98 = vunpack.c.l.b16 %v60
  %v99 = vunpack.c.l.b16 %v61
  %v100 = vunpack.c.l.b16 %v62
  %v101 = vunpack.c.l.b16 %v63
  %v102 = vunpack.c.l.b16 %v64
  %v103 = vunpack.c.l.b16 %v65
  %v104 = vunpack.c.l.b16 %v66
  %v105 = vunpack.c.l.b16 %v67
  %v106 = vpack.c.b16 %v91, %v90
  %v107 = vpack.c.b16 %v93, %v92
  %v108 = vpack.c.b16 %v95, %v94
  %v109 = vpack.c.b16 %v97, %v96
  %v110 = vpack.c.b16 %v99, %v98
  %v111 = vpack.c.b16 %v101, %v100
  %v112 = vpack.c.b16 %v103, %v102
  %v113 = vpack.c.b16 %v105, %v104
  %122 = vmatpush.bf16.msra.mxu0 %v113
  %123 = vmatpush.bf16.msra.mxu0 %v112
  %124 = vmatpush.bf16.msra.mxu0 %v111
  %125 = vmatpush.bf16.msra.mxu0 %v110
  %126 = vmatpush.bf16.msra.mxu0 %v109
  %127 = vmatpush.bf16.msra.mxu0 %v108
  %128 = vmatpush.bf16.msra.mxu0 %v107
  %129 = vmatpush.bf16.msra.mxu0 %v106
  %130 = vmatmul.bf16.gmra.mxu0 %v72
  %v131 = vpop.f32.mrf.mxu0
  %v132 = vadd.f32 0.0, %v131
  %v133 = vpop.f32.mrf.mxu0
  %v134 = vadd.f32 0.0, %v133
  %135 = vdwg.mxu0
  %v138 = vunpack.c.l.b16 %v32
  %v139 = vunpack.c.l.b16 %v33
  %v140 = vpack.c.b16 %v139, %v138
  %v158 = vunpack.c.l.b16 %v34
  %v159 = vunpack.c.l.b16 %v35
  %v160 = vunpack.c.l.b16 %v36
  %v161 = vunpack.c.l.b16 %v37
  %v162 = vunpack.c.l.b16 %v38
  %v163 = vunpack.c.l.b16 %v39
  %v164 = vunpack.c.l.b16 %v40
  %v165 = vunpack.c.l.b16 %v41
  %v166 = vunpack.c.l.b16 %v42
  %v167 = vunpack.c.l.b16 %v43
  %v168 = vunpack.c.l.b16 %v44
  %v169 = vunpack.c.l.b16 %v45
  %v170 = vunpack.c.l.b16 %v46
  %v171 = vunpack.c.l.b16 %v47
  %v172 = vunpack.c.l.b16 %v48
  %v173 = vunpack.c.l.b16 %v49
  %v174 = vpack.c.b16 %v159, %v158
  %v175 = vpack.c.b16 %v161, %v160
  %v176 = vpack.c.b16 %v163, %v162
  %v177 = vpack.c.b16 %v165, %v164
  %v178 = vpack.c.b16 %v167, %v166
  %v179 = vpack.c.b16 %v169, %v168
  %v180 = vpack.c.b16 %v171, %v170
  %v181 = vpack.c.b16 %v173, %v172
  %190 = vmatpush.bf16.msra.mxu0 %v181
  %191 = vmatpush.bf16.msra.mxu0 %v180
  %192 = vmatpush.bf16.msra.mxu0 %v179
  %193 = vmatpush.bf16.msra.mxu0 %v178
  %194 = vmatpush.bf16.msra.mxu0 %v177
  %195 = vmatpush.bf16.msra.mxu0 %v176
  %196 = vmatpush.bf16.msra.mxu0 %v175
  %197 = vmatpush.bf16.msra.mxu0 %v174
  %198 = vmatmul.bf16.gmra.mxu0 %v140
  %v199 = vpop.f32.mrf.mxu0
  %v200 = vadd.f32 %v132, %v199
  %v201 = vpop.f32.mrf.mxu0
  %v202 = vadd.f32 %v134, %v201
  %203 = vdwg.mxu0
  %v204 = vld [vmem:[%s2] sm:$0xff]
  %v205 = vld [vmem:[%s2 + $0x8] sm:$0xff]
  %207 = vset.pattern.permute.xlu0 0
  %208 = vperm.xlu0 %207, %v204
  %v209 = vpop.permute.xlu0 %208
  %212 = vset.pattern.permute.xlu0 0
  %213 = vperm.xlu0 %212, %v205
  %v214 = vpop.permute.xlu0 %213
  %v216 = vld [vmem:[%s5] sm:$0x1]
  %v218 = vperm.slane %v216, 0
  %v220 = vmul.f32 %v209, %v218
  %v221 = vmul.f32 %v214, %v218
  %v222 = vadd.f32 %v200, %v220
  %v223 = vadd.f32 %v202, %v221
  %v224 = vld [vmem:[%s6] sm:$0x1]
  %v226 = vperm.slane %v224, 0
  %v228 = vadd.f32 %v222, %v226
  %v229 = vadd.f32 %v223, %v226
  %v230 = vmax.f32 %v228, 0.0
  %v231 = vmax.f32 %v229, 0.0
  %v232 = vpack.c.bf16 %v231, %v230
  %v233 = vld [vmem:[%s7] sm:$0xf]
  %v234 = vld [vmem:[%s7 + $0x4] sm:$0xf]
  %v235 = vld [vmem:[%s7 + $0x8] sm:$0xf]
  %v236 = vld [vmem:[%s7 + $0xc] sm:$0xf]
  %v237 = vld [vmem:[%s7 + $0x10] sm:$0xf]
  %v238 = vld [vmem:[%s7 + $0x14] sm:$0xf]
  %v239 = vld [vmem:[%s7 + $0x18] sm:$0xf]
  %v240 = vld [vmem:[%s7 + $0x1c] sm:$0xf]
  %v241 = vld [vmem:[%s7 + $0x20] sm:$0xf]
  %v242 = vld [vmem:[%s7 + $0x24] sm:$0xf]
  %v243 = vld [vmem:[%s7 + $0x28] sm:$0xf]
  %v244 = vld [vmem:[%s7 + $0x2c] sm:$0xf]
  %v245 = vld [vmem:[%s7 + $0x30] sm:$0xf]
  %v246 = vld [vmem:[%s7 + $0x34] sm:$0xf]
  %v247 = vld [vmem:[%s7 + $0x38] sm:$0xf]
  %v248 = vld [vmem:[%s7 + $0x3c] sm:$0xf]
  %v249 = vld [vmem:[%s8] sm:$0x1]
  %v251 = vperm.slane %v249, 0
  %v269 = vunpack.c.l.b16 %v233
  %v270 = vunpack.c.l.b16 %v234
  %v271 = vunpack.c.l.b16 %v235
  %v272 = vunpack.c.l.b16 %v236
  %v273 = vunpack.c.l.b16 %v237
  %v274 = vunpack.c.l.b16 %v238
  %v275 = vunpack.c.l.b16 %v239
  %v276 = vunpack.c.l.b16 %v240
  %v277 = vunpack.c.l.b16 %v241
  %v278 = vunpack.c.l.b16 %v242
  %v279 = vunpack.c.l.b16 %v243
  %v280 = vunpack.c.l.b16 %v244
  %v281 = vunpack.c.l.b16 %v245
  %v282 = vunpack.c.l.b16 %v246
  %v283 = vunpack.c.l.b16 %v247
  %v284 = vunpack.c.l.b16 %v248
  %v285 = vpack.c.b16 %v270, %v269
  %v286 = vpack.c.b16 %v272, %v271
  %v287 = vpack.c.b16 %v274, %v273
  %v288 = vpack.c.b16 %v276, %v275
  %v289 = vpack.c.b16 %v278, %v277
  %v290 = vpack.c.b16 %v280, %v279
  %v291 = vpack.c.b16 %v282, %v281
  %v292 = vpack.c.b16 %v284, %v283
  %301 = vmatpush.bf16.msra.mxu0 %v292
  %302 = vmatpush.bf16.msra.mxu0 %v291
  %303 = vmatpush.bf16.msra.mxu0 %v290
  %304 = vmatpush.bf16.msra.mxu0 %v289
  %305 = vmatpush.bf16.msra.mxu0 %v288
  %306 = vmatpush.bf16.msra.mxu0 %v287
  %307 = vmatpush.bf16.msra.mxu0 %v286
  %308 = vmatpush.bf16.msra.mxu0 %v285
  %309 = vmatmul.bf16.gmra.mxu0 %v232
  %v310 = vpop.f32.mrf.mxu0
  %v311 = vadd.f32 %v251, %v310
  %v312 = vpop.f32.mrf.mxu0
  %v313 = vadd.f32 %v251, %v312
  %314 = vdwg.mxu0
  %315 = vst [vmem:[%s9] sm:$0xff] %v311
  %316 = vst [vmem:[%s9 + $0x8] sm:$0xff] %v313
  // Predicated region
  $region38: #{bond_break_gnn_forward.9} parent=0 // pred_check
    _
  $region39: #{bond_break_gnn_forward.9} parent=0 // pred_check_branch
    %318 = sbr.rel (0) target = $region41
  $region40: #{bond_break_gnn_forward.9} parent=0 // pred_region
    _
  $region41: #{bond_break_gnn_forward.9} parent=0 // pred_fallthru
    _
  // Predicated region
  $region42: #{bond_break_gnn_forward.9} parent=0 // pred_check
    _
  $region43: #{bond_break_gnn_forward.9} parent=0 // pred_check_branch
    %320 = sbr.rel (0) target = $region45
  $region44: #{bond_break_gnn_forward.9} parent=0 // pred_region
    _
  $region45: #{bond_break_gnn_forward.9} parent=0 // pred_fallthru
    _

</llo_original>
